<compile_context>
chip_gen: v7x
topology: tpu7x:2x2x1
jax: 0.10.0
libtpu: 0.0.40
codegen_flags: <defaults>
</compile_context>

<pallas_src>
import jax
import jax.numpy as jnp
from jax.experimental import pallas as pl
from jax.experimental.pallas import tpu as pltpu


def _round_up(x, m):
    return ((x + m - 1) // m) * m


def biconv_kernel(a_ref, xk_ref, xr_ref, w_ref, b_ref, out_ref,
                  accf_ref, accr_ref):
    k = pl.program_id(1)

    @pl.when(k == 0)
    def _():
        accf_ref[...] = jnp.zeros_like(accf_ref)
        accr_ref[...] = jnp.zeros_like(accr_ref)

    # Shared K-tile of node features feeds both aggregation directions.
    xk = xk_ref[...]                      # (TK, F_in) bf16
    accf_ref[...] += jnp.dot(a_ref[0], xk, preferred_element_type=jnp.float32)
    accr_ref[...] += jnp.dot(a_ref[1], xk, preferred_element_type=jnp.float32)

    @pl.when(k == pl.num_programs(1) - 1)
    def _():
        # Fused projection: [x | agg_fwd | agg_rev] @ W_big + B_big
        # W_big = [[Wr_f, Wr_r], [Wn_f, 0], [0, Wn_r]]  -> result is already
        # the concatenated [fwd || rev] output, written lane-dense.
        xin = jnp.concatenate(
            [xr_ref[...],
             accf_ref[...].astype(xr_ref.dtype),
             accr_ref[...].astype(xr_ref.dtype)],
            axis=-1)                       # (TM, 3*F_in) bf16
        proj = jnp.dot(xin, w_ref[...], preferred_element_type=jnp.float32)
        out_ref[...] = (proj + b_ref[...]).astype(out_ref.dtype)


def _dense_norm_adj(edge_index, num_nodes):
    """A[dst, src] = #edges src->dst, then row-normalized (mean aggregation)."""
    src, dst = edge_index[0], edge_index[1]
    a = jnp.zeros((num_nodes, num_nodes), jnp.float32).at[dst, src].add(1.0)
    deg = a.sum(axis=1, keepdims=True)
    return a / jnp.maximum(deg, 1.0)


def biconv(x, edge_index, params):
    N, F_in = x.shape
    F_out = params["w_root_fwd"].shape[1]

    # ---- tile sizes / padding ------------------------------------------------
    if N <= 1024:
        TM, TK = 128, 128
    else:
        TM, TK = 256, 512                 # sized for v7x's 64 MiB VMEM budget
    Np = _round_up(N, max(TM, TK))        # TK is a multiple of TM in both cases
    Fp2 = _round_up(2 * F_out, 128)       # lane-dense output width

    # ---- glue: edge list -> dense normalized adjacencies, stacked & padded ---
    a_fwd = _dense_norm_adj(edge_index, N)
    a_rev = _dense_norm_adj(edge_index[::-1], N)   # rev_edge_index = edge_index[[1, 0]]
    a = jnp.stack([a_fwd, a_rev], axis=0)
    a = jnp.pad(a, ((0, 0), (0, Np - N), (0, Np - N))).astype(jnp.bfloat16)
    x_p = jnp.pad(x, ((0, Np - N), (0, 0))).astype(jnp.bfloat16)

    # ---- fuse the four projections into one weight / bias ---------------------
    zeros = jnp.zeros((F_in, F_out), jnp.float32)
    w_big = jnp.concatenate([
        jnp.concatenate([params["w_root_fwd"], params["w_root_rev"]], axis=1),
        jnp.concatenate([params["w_nei_fwd"], zeros], axis=1),
        jnp.concatenate([zeros, params["w_nei_rev"]], axis=1),
    ], axis=0)                                           # (3*F_in, 2*F_out)
    b_big = jnp.concatenate([params["b_fwd"], params["b_rev"]], axis=1)

    w_big = jnp.pad(w_big, ((0, 0), (0, Fp2 - 2 * F_out))).astype(jnp.bfloat16)
    b_big = jnp.pad(b_big, ((0, 0), (0, Fp2 - 2 * F_out))).astype(jnp.float32)

    grid = (Np // TM, Np // TK)

    cost = pl.CostEstimate(
        flops=2 * (2 * Np * Np * F_in) + 2 * Np * (3 * F_in) * Fp2,
        transcendentals=0,
        bytes_accessed=(2 * Np * Np * 2            # bf16 adjacencies
                        + 2 * Np * F_in * 2        # x read twice (row + K tiles)
                        + Np * Fp2 * 4             # f32 output
                        + 3 * F_in * Fp2 * 2 + Fp2 * 4),
    )

    out = pl.pallas_call(
        biconv_kernel,
        grid_spec=pltpu.PrefetchScalarGridSpec(
            num_scalar_prefetch=0,
            grid=grid,
            in_specs=[
                # stacked adjacencies: both directions share one DMA stream
                pl.BlockSpec((2, TM, TK), lambda i, k: (0, i, k)),
                # x K-tile for aggregation
                pl.BlockSpec((TK, F_in), lambda i, k: (k, 0)),
                # x row-tile for the root projection
                pl.BlockSpec((TM, F_in), lambda i, k: (i, 0)),
                # fused weights / bias: VMEM-resident across all grid steps
                pl.BlockSpec((3 * F_in, Fp2), lambda i, k: (0, 0)),
                pl.BlockSpec((1, Fp2), lambda i, k: (0, 0)),
            ],
            out_specs=pl.BlockSpec((TM, Fp2), lambda i, k: (i, 0)),
            scratch_shapes=[
                pltpu.VMEM((TM, F_in), jnp.float32),   # fwd aggregation acc
                pltpu.VMEM((TM, F_in), jnp.float32),   # rev aggregation acc
            ],
        ),
        out_shape=jax.ShapeDtypeStruct((Np, Fp2), jnp.float32),
        compiler_params=pltpu.CompilerParams(
            dimension_semantics=("parallel", "arbitrary"),
            vmem_limit_bytes=48 * 1024 * 1024,
        ),
        cost_estimate=cost,
    )(a, x_p, x_p, w_big, b_big)

    # strip row / lane padding
    return out[:N, :2 * F_out]


def biconv_reference(x, edge_index, params):
    """Plain-JAX reference mirroring the kernel's bf16 quantization of the
    streamed operands (adjacency, x, weights, aggregations) with f32 accumulation."""
    def q(a):
        return a.astype(jnp.bfloat16).astype(jnp.float32)

    N = x.shape[0]
    a_fwd = q(_dense_norm_adj(edge_index, N))
    a_rev = q(_dense_norm_adj(edge_index[::-1], N))
    xb = q(x)
    agg_f = q(a_fwd @ xb)
    agg_r = q(a_rev @ xb)
    fwd = xb @ q(params["w_root_fwd"]) + agg_f @ q(params["w_nei_fwd"]) + params["b_fwd"]
    rev = xb @ q(params["w_root_rev"]) + agg_r @ q(params["w_nei_rev"]) + params["b_rev"]
    return jnp.concatenate([fwd, rev], axis=-1)


if __name__ == "__main__":
    # Small but non-trivial: N=256 exercises a (2, 2) grid (row tiles + K reduction).
    N, F_IN, F_OUT, E = 256, 32, 32, 1024

    key = jax.random.PRNGKey(0)
    kx, ke, k1, k2, k3, k4, k5, k6 = jax.random.split(key, 8)

    x = jax.random.normal(kx, (N, F_IN), dtype=jnp.float32)
    edge_index = jax.random.randint(ke, (2, E), 0, N, dtype=jnp.int32)

    scale = 1.0 / jnp.sqrt(jnp.float32(F_IN))
    params = {
        "w_root_fwd": scale * jax.random.normal(k1, (F_IN, F_OUT), dtype=jnp.float32),
        "w_nei_fwd":  scale * jax.random.normal(k2, (F_IN, F_OUT), dtype=jnp.float32),
        "b_fwd":      0.1 * jax.random.normal(k5, (1, F_OUT), dtype=jnp.float32),
        "w_root_rev": scale * jax.random.normal(k3, (F_IN, F_OUT), dtype=jnp.float32),
        "w_nei_rev":  scale * jax.random.normal(k4, (F_IN, F_OUT), dtype=jnp.float32),
        "b_rev":      0.1 * jax.random.normal(k6, (1, F_OUT), dtype=jnp.float32),
    }

    out = biconv(x, edge_index, params)
    out = jax.block_until_ready(out)

    ref = biconv_reference(x, edge_index, params)
    assert out.shape == (N, 2 * F_OUT), out.shape
    assert jnp.allclose(out, ref, atol=5e-3, rtol=5e-3), \
        f"mismatch vs reference, max abs err={jnp.max(jnp.abs(out - ref))}"

    print("KERNEL_OK")
</pallas_src>

<mosaic_0001>
module attributes {stable_mosaic.version = 11 : i64} {
  func.func @biconv_kernel(%arg0: i32, %arg1: i32, %arg2: memref<2x128x128xbf16, #tpu.memory_space<vmem>>, %arg3: memref<128x32xbf16, #tpu.memory_space<vmem>>, %arg4: memref<128x32xbf16, #tpu.memory_space<vmem>>, %arg5: memref<96x128xbf16, #tpu.memory_space<vmem>>, %arg6: memref<1x128xf32, #tpu.memory_space<vmem>>, %arg7: memref<128x128xf32, #tpu.memory_space<vmem>>, %arg8: memref<128x32xf32, #tpu.memory_space<vmem>>, %arg9: memref<128x32xf32, #tpu.memory_space<vmem>>) attributes {dimension_semantics = [#tpu.dimension_semantics<parallel>, #tpu.dimension_semantics<arbitrary>], iteration_bounds = array<i64: 2, 2>, scalar_prefetch = 0 : i64, scratch_operands = 2 : i64, tpu.core_type = #tpu.core_type<tc>, window_params = [{transform_indices = @transform_0, window_bounds = array<i64: 2, 128, 128>}, {transform_indices = @transform_1, window_bounds = array<i64: 128, 32>}, {transform_indices = @transform_2, window_bounds = array<i64: 128, 32>}, {pipeline_mode = #tpu.pipeline_mode<synchronous>, transform_indices = @transform_3, window_bounds = array<i64: 96, 128>}, {pipeline_mode = #tpu.pipeline_mode<synchronous>, transform_indices = @transform_4, window_bounds = array<i64: 1, 128>}, {transform_indices = @transform_5, window_bounds = array<i64: 128, 128>}]} {
    %c0_i32 = arith.constant 0 : i32
    %0 = arith.cmpi eq, %arg1, %c0_i32 : i32
    %1 = arith.extui %0 : i1 to i32
    %c0_i32_0 = arith.constant 0 : i32
    %2 = arith.cmpi ne, %1, %c0_i32_0 : i32
    scf.if %2 {
      %cst_17 = arith.constant 0.000000e+00 : f32
      %19 = vector.broadcast %cst_17 : f32 to vector<128x32xf32>
      %c0_18 = arith.constant 0 : index
      %c0_19 = arith.constant 0 : index
      %20 = vector.load %arg8[%c0_18, %c0_19] : memref<128x32xf32, #tpu.memory_space<vmem>>, vector<128x32xf32>
      tpu.vector_store %arg8[%c0_18, %c0_19], %19 {strides = array<i32>} : memref<128x32xf32, #tpu.memory_space<vmem>>, vector<128x32xf32>,
      %cst_20 = arith.constant 0.000000e+00 : f32
      %21 = vector.broadcast %cst_20 : f32 to vector<128x32xf32>
      %c0_21 = arith.constant 0 : index
      %c0_22 = arith.constant 0 : index
      %22 = vector.load %arg9[%c0_21, %c0_22] : memref<128x32xf32, #tpu.memory_space<vmem>>, vector<128x32xf32>
      tpu.vector_store %arg9[%c0_21, %c0_22], %21 {strides = array<i32>} : memref<128x32xf32, #tpu.memory_space<vmem>>, vector<128x32xf32>,
    } else {
    }
    %c0 = arith.constant 0 : index
    %c0_1 = arith.constant 0 : index
    %3 = vector.load %arg3[%c0, %c0_1] : memref<128x32xbf16, #tpu.memory_space<vmem>>, vector<128x32xbf16>
    %c0_2 = arith.constant 0 : index
    %c0_3 = arith.constant 0 : index
    %4 = vector.load %arg8[%c0_2, %c0_3] : memref<128x32xf32, #tpu.memory_space<vmem>>, vector<128x32xf32>
    %c0_4 = arith.constant 0 : index
    %c0_5 = arith.constant 0 : index
    %c0_6 = arith.constant 0 : index
    %5 = vector.load %arg2[%c0_4, %c0_5, %c0_6] : memref<2x128x128xbf16, #tpu.memory_space<vmem>>, vector<1x128x128xbf16>
    %6 = vector.shape_cast %5 : vector<1x128x128xbf16> to vector<128x128xbf16>
    %cst = arith.constant dense<0.000000e+00> : vector<128x32xf32>
    %7 = tpu.matmul %6, %3, %cst {dimension_numbers = #tpu.dot_dimension_numbers<[1], [0], [0], [1], [0, 0, 1, 1], [], []>} : vector<128x128xbf16>, vector<128x32xbf16>, vector<128x32xf32> -> vector<128x32xf32>
    %8 = arith.addf %4, %7 : vector<128x32xf32>
    %c0_7 = arith.constant 0 : index
    %c0_8 = arith.constant 0 : index
    %9 = vector.load %arg8[%c0_7, %c0_8] : memref<128x32xf32, #tpu.memory_space<vmem>>, vector<128x32xf32>
    tpu.vector_store %arg8[%c0_7, %c0_8], %8 {strides = array<i32>} : memref<128x32xf32, #tpu.memory_space<vmem>>, vector<128x32xf32>,
    %c0_9 = arith.constant 0 : index
    %c0_10 = arith.constant 0 : index
    %10 = vector.load %arg9[%c0_9, %c0_10] : memref<128x32xf32, #tpu.memory_space<vmem>>, vector<128x32xf32>
    %c1 = arith.constant 1 : index
    %c0_11 = arith.constant 0 : index
    %c0_12 = arith.constant 0 : index
    %11 = vector.load %arg2[%c1, %c0_11, %c0_12] : memref<2x128x128xbf16, #tpu.memory_space<vmem>>, vector<1x128x128xbf16>
    %12 = vector.shape_cast %11 : vector<1x128x128xbf16> to vector<128x128xbf16>
    %cst_13 = arith.constant dense<0.000000e+00> : vector<128x32xf32>
    %13 = tpu.matmul %12, %3, %cst_13 {dimension_numbers = #tpu.dot_dimension_numbers<[1], [0], [0], [1], [0, 0, 1, 1], [], []>} : vector<128x128xbf16>, vector<128x32xbf16>, vector<128x32xf32> -> vector<128x32xf32>
    %14 = arith.addf %10, %13 : vector<128x32xf32>
    %c0_14 = arith.constant 0 : index
    %c0_15 = arith.constant 0 : index
    %15 = vector.load %arg9[%c0_14, %c0_15] : memref<128x32xf32, #tpu.memory_space<vmem>>, vector<128x32xf32>
    tpu.vector_store %arg9[%c0_14, %c0_15], %14 {strides = array<i32>} : memref<128x32xf32, #tpu.memory_space<vmem>>, vector<128x32xf32>,
    %c1_i32 = arith.constant 1 : i32
    %16 = arith.cmpi eq, %arg1, %c1_i32 : i32
    %17 = arith.extui %16 : i1 to i32
    %c0_i32_16 = arith.constant 0 : i32
    %18 = arith.cmpi ne, %17, %c0_i32_16 : i32
    scf.if %18 {
      %c0_17 = arith.constant 0 : index
      %c0_18 = arith.constant 0 : index
      %19 = vector.load %arg4[%c0_17, %c0_18] : memref<128x32xbf16, #tpu.memory_space<vmem>>, vector<128x32xbf16>
      %c0_19 = arith.constant 0 : index
      %c0_20 = arith.constant 0 : index
      %20 = vector.load %arg8[%c0_19, %c0_20] : memref<128x32xf32, #tpu.memory_space<vmem>>, vector<128x32xf32>
      %21 = arith.truncf %20 : vector<128x32xf32> to vector<128x32xbf16>
      %c0_21 = arith.constant 0 : index
      %c0_22 = arith.constant 0 : index
      %22 = vector.load %arg9[%c0_21, %c0_22] : memref<128x32xf32, #tpu.memory_space<vmem>>, vector<128x32xf32>
      %23 = arith.truncf %22 : vector<128x32xf32> to vector<128x32xbf16>
      %24 = tpu.concatenate %19, %21, %23 in 1 : vector<128x32xbf16>, vector<128x32xbf16>, vector<128x32xbf16> -> vector<128x96xbf16>
      %c0_23 = arith.constant 0 : index
      %c0_24 = arith.constant 0 : index
      %25 = vector.load %arg5[%c0_23, %c0_24] : memref<96x128xbf16, #tpu.memory_space<vmem>>, vector<96x128xbf16>
      %cst_25 = arith.constant dense<0.000000e+00> : vector<128x128xf32>
      %26 = tpu.matmul %24, %25, %cst_25 {dimension_numbers = #tpu.dot_dimension_numbers<[1], [0], [0], [1], [0, 0, 1, 1], [], []>} : vector<128x96xbf16>, vector<96x128xbf16>, vector<128x128xf32> -> vector<128x128xf32>
      %c0_26 = arith.constant 0 : index
      %c0_27 = arith.constant 0 : index
      %27 = vector.load %arg6[%c0_26, %c0_27] : memref<1x128xf32, #tpu.memory_space<vmem>>, vector<1x128xf32>
      %28 = vector.broadcast %27 : vector<1x128xf32> to vector<128x128xf32>
      %29 = arith.addf %26, %28 : vector<128x128xf32>
      %c0_28 = arith.constant 0 : index
      %c0_29 = arith.constant 0 : index
      %30 = vector.load %arg7[%c0_28, %c0_29] : memref<128x128xf32, #tpu.memory_space<vmem>>, vector<128x128xf32>
      tpu.vector_store %arg7[%c0_28, %c0_29], %29 {strides = array<i32>} : memref<128x128xf32, #tpu.memory_space<vmem>>, vector<128x128xf32>,
    } else {
    }
    return
  }
  func.func @transform_0(%arg0: i32, %arg1: i32) -> (i32, i32, i32) {
    %c0_i32 = arith.constant 0 : i32
    %c0_i32_0 = arith.constant 0 : i32
    return %c0_i32, %arg0, %arg1 : i32, i32, i32
  }
  func.func @transform_1(%arg0: i32, %arg1: i32) -> (i32, i32) {
    %c0_i32 = arith.constant 0 : i32
    %c0_i32_0 = arith.constant 0 : i32
    return %arg1, %c0_i32 : i32, i32
  }
  func.func @transform_2(%arg0: i32, %arg1: i32) -> (i32, i32) {
    %c0_i32 = arith.constant 0 : i32
    %c0_i32_0 = arith.constant 0 : i32
    return %arg0, %c0_i32 : i32, i32
  }
  func.func @transform_3(%arg0: i32, %arg1: i32) -> (i32, i32) {
    %c0_i32 = arith.constant 0 : i32
    %c0_i32_0 = arith.constant 0 : i32
    %c0_i32_1 = arith.constant 0 : i32
    return %c0_i32, %c0_i32_0 : i32, i32
  }
  func.func @transform_4(%arg0: i32, %arg1: i32) -> (i32, i32) {
    %c0_i32 = arith.constant 0 : i32
    %c0_i32_0 = arith.constant 0 : i32
    %c0_i32_1 = arith.constant 0 : i32
    return %c0_i32, %c0_i32_0 : i32, i32
  }
  func.func @transform_5(%arg0: i32, %arg1: i32) -> (i32, i32) {
    %c0_i32 = arith.constant 0 : i32
    %c0_i32_0 = arith.constant 0 : i32
    return %arg0, %c0_i32 : i32, i32
  }
}

</mosaic_0001>

<llo_original>
// kernel: tpu_custom_call.1
$region0: #{tpu_custom_call.1}
  #allocation0 [shape = 'u32[]', space=smem, size = 0x4, offset = 0x4, fixed_abs, tag = 'smem constant byte address 0x4 - core index']
  #allocation1 [shape = 'u32[144,128]{1,0:T(1,128)}', space=vmem, size = 0x12000, scoped, tag = 'internal scratch']
  #allocation2 [shape = 'f32[128,32]{1,0:T(8,128)}', space=vmem, size = 0x10000, scoped, tag = 'scratch operand']
  #allocation3 [shape = 'f32[128,32]{1,0:T(8,128)}', space=vmem, size = 0x10000, scoped, tag = 'scratch operand']
  #allocation8 [shape = 's32[]', space=sflag, size = 0x4, offset = 0, fixed_abs, tag = 'sflag constant byte address 0x0 - dummy sync flag']
  %s0 = inlined_call_operand.hbm [shape: bf16[2,256,256], index: 0, kind: input, shape index: {}]
  %s1 = inlined_call_operand.vmem [shape: bf16[256,32], index: 1, kind: input, shape index: {}]
  %s2 = inlined_call_operand.vmem [shape: bf16[256,32], index: 2, kind: input, shape index: {}]
  %s3 = inlined_call_operand.vmem [shape: bf16[96,128], index: 3, kind: input, shape index: {}]
  %s4 = inlined_call_operand.vmem [shape: f32[1,128], index: 4, kind: input, shape index: {}]
  %s5 = inlined_call_operand.hbm [shape: f32[256,128], index: 5, kind: output, shape index: {}]
  %s6 = sld [smem:[#allocation0]]
  $region65: #{tpu_custom_call.1} parent=0
    _
  %s8 = ssub.s32 1, %s6
  %s9 = scalar_select 0, %s8, %s6
  $region1: #{tpu_custom_call.1} parent=0
    #allocation4 [shape = 'u8[131072]{0}', space=vmem, size = 0x20000, scoped, tag = 'input window, operand 0']
    #allocation5 [shape = 's32[2]{0}', space=sflag, size = 0x8, scoped, tag = 'scoped memory for tpu_custom_call.1']
    #allocation6 [shape = 's32[2]{0}', space=sflag, size = 0x8, scoped, tag = 'scoped memory for tpu_custom_call.1']
    #allocation7 [shape = 'u8[131072]{0}', space=vmem, size = 0x20000, scoped, tag = 'output window, operand 0']
    %10 = vsyncpa [#allocation5], 0
    %s11 = scalar_lea.sflag [#allocation5], 1
    %12 = vsyncpa %s11, 0
    %13 = vsyncpa [#allocation6], 0
    %s14 = scalar_lea.sflag [#allocation6], 1
    %15 = vsyncpa %s14, 0
    loop: start=0, step=1, limit=6
    $region2: #{tpu_custom_call.1} parent=1 // loop_pre_header
      _
    $region3: #{tpu_custom_call.1} parent=1 // loop_header
      %s17 = sphi 0, %s21
      %p18 = scmp.ge.s32.totalorder %s17, 6
      %s24 = sphi 0, %s36
      %s25 = sphi 0, %s32
      %s26 = sphi 0, %s24
      %s27 = sphi 0, %s25
      %s28 = sphi 0, %s26
      %s29 = sphi 0, %s27
      %s41 = sphi 0, %s43
      %s44 = sphi 0, %s41
      %s45 = sphi 0, %s44
      %s61 = sphi 0, %s45
      %s67 = sphi 0, %s69
      %s70 = sphi 0, %s67
      %s71 = sphi 0, %s70
      %s87 = sphi 0, %s71
      %s93 = sphi 0, %s95
      %s96 = sphi 0, %s93
      %s97 = sphi 0, %s96
      %s113 = sphi 0, %s97
      %s117 = sphi 0, %s117
      %s119 = sphi 0, %s117
      %s120 = sphi 0, %s119
      %s134 = sphi 0, %s120
      %s138 = sphi 0, %s138
      %s140 = sphi 0, %s138
      %s141 = sphi 0, %s140
      %s155 = sphi 0, %s141
      %s161 = sphi 0, %s163
      %s164 = sphi 0, %s161
      %s165 = sphi 0, %s164
      %s181 = sphi 0, %s165
    $region4: #{tpu_custom_call.1} parent=1 // loop_header_branch
      %20 = sbr.rel (%p18) target = $region8
    $region5: #{tpu_custom_call.1} parent=1 // loop_body
      %s22 = ssub.s32 %s17, 1
      %s23 = ssub.s32 %s17, 2
      %s30 = sadd.s32 1, %s25
      %p31 = scmp.ge.s32.totalorder %s30, 2
      %s32 = scalar_select %p31, 0, %s30
      %s33 = sadd.s32 1, %s24
      %s34 = scalar_select %p31, %s33, %s24
      %p35 = scmp.ge.s32.totalorder %s34, 2
      %s36 = scalar_select %p35, 0, %s34
      %s37 = ssub.s32 %s24, %s36
      %s38 = ssub.s32 %s25, %s32
      %s39 = sor.u32 %s37, %s38
      %p40 = scmp.eq.s32.totalorder %s39, 0
      %s42 = sadd.s32 %s41, 1
      %s43 = scalar_select %p40, %s41, %s42
      %p46 = pneg %p40
      %p47 = scmp.eq.s32.totalorder %s17, 3
      %p48 = por %p46, %p47
      %p49 = scmp.ne.s32.totalorder %s41, %s44
      %p50 = scmp.eq.s32.totalorder %s17, 0
      %p51 = por %p49, %p50
      %p52 = scmp.ne.s32.totalorder %s41, %s44
      %p53 = scmp.eq.s32.totalorder %s22, 3
      %p54 = por %p52, %p53
      %p55 = scmp.ne.s32.totalorder %s44, %s45
      %p56 = scmp.eq.s32.totalorder %s22, 0
      %p57 = por %p55, %p56
      %p58 = scmp.ne.s32.totalorder %s44, %s45
      %p59 = scmp.eq.s32.totalorder %s23, 3
      %p60 = por %p58, %p59
      %p62 = scmp.ne.s32.totalorder %s45, %s61
      %p63 = scmp.eq.s32.totalorder %s23, 0
      %p64 = por %p62, %p63
      %s65 = ssub.s32 %s25, %s32
      %p66 = scmp.eq.s32.totalorder %s65, 0
      %s68 = sadd.s32 %s67, 1
      %s69 = scalar_select %p66, %s67, %s68
      %p72 = pneg %p66
      %p73 = scmp.eq.s32.totalorder %s17, 3
      %p74 = por %p72, %p73
      %p75 = scmp.ne.s32.totalorder %s67, %s70
      %p76 = scmp.eq.s32.totalorder %s17, 0
      %p77 = por %p75, %p76
      %p78 = scmp.ne.s32.totalorder %s67, %s70
      %p79 = scmp.eq.s32.totalorder %s22, 3
      %p80 = por %p78, %p79
      %p81 = scmp.ne.s32.totalorder %s70, %s71
      %p82 = scmp.eq.s32.totalorder %s22, 0
      %p83 = por %p81, %p82
      %p84 = scmp.ne.s32.totalorder %s70, %s71
      %p85 = scmp.eq.s32.totalorder %s23, 3
      %p86 = por %p84, %p85
      %p88 = scmp.ne.s32.totalorder %s71, %s87
      %p89 = scmp.eq.s32.totalorder %s23, 0
      %p90 = por %p88, %p89
      %s91 = ssub.s32 %s24, %s36
      %p92 = scmp.eq.s32.totalorder %s91, 0
      %s94 = sadd.s32 %s93, 1
      %s95 = scalar_select %p92, %s93, %s94
      %p98 = pneg %p92
      %p99 = scmp.eq.s32.totalorder %s17, 3
      %p100 = por %p98, %p99
      %p101 = scmp.ne.s32.totalorder %s93, %s96
      %p102 = scmp.eq.s32.totalorder %s17, 0
      %p103 = por %p101, %p102
      %p104 = scmp.ne.s32.totalorder %s93, %s96
      %p105 = scmp.eq.s32.totalorder %s22, 3
      %p106 = por %p104, %p105
      %p107 = scmp.ne.s32.totalorder %s96, %s97
      %p108 = scmp.eq.s32.totalorder %s22, 0
      %p109 = por %p107, %p108
      %p110 = scmp.ne.s32.totalorder %s96, %s97
      %p111 = scmp.eq.s32.totalorder %s23, 3
      %p112 = por %p110, %p111
      %p114 = scmp.ne.s32.totalorder %s97, %s113
      %p115 = scmp.eq.s32.totalorder %s23, 0
      %p116 = por %p114, %p115
      %s118 = sadd.s32 %s117, 1
      %p121 = scmp.eq.s32.totalorder %s17, 3
      %p122 = scmp.ne.s32.totalorder %s117, %s119
      %p123 = scmp.eq.s32.totalorder %s17, 0
      %p124 = por %p122, %p123
      %p125 = scmp.ne.s32.totalorder %s117, %s119
      %p126 = scmp.eq.s32.totalorder %s22, 3
      %p127 = por %p125, %p126
      %p128 = scmp.ne.s32.totalorder %s119, %s120
      %p129 = scmp.eq.s32.totalorder %s22, 0
      %p130 = por %p128, %p129
      %p131 = scmp.ne.s32.totalorder %s119, %s120
      %p132 = scmp.eq.s32.totalorder %s23, 3
      %p133 = por %p131, %p132
      %p135 = scmp.ne.s32.totalorder %s120, %s134
      %p136 = scmp.eq.s32.totalorder %s23, 0
      %p137 = por %p135, %p136
      %s139 = sadd.s32 %s138, 1
      %p142 = scmp.eq.s32.totalorder %s17, 3
      %p143 = scmp.ne.s32.totalorder %s138, %s140
      %p144 = scmp.eq.s32.totalorder %s17, 0
      %p145 = por %p143, %p144
      %p146 = scmp.ne.s32.totalorder %s138, %s140
      %p147 = scmp.eq.s32.totalorder %s22, 3
      %p148 = por %p146, %p147
      %p149 = scmp.ne.s32.totalorder %s140, %s141
      %p150 = scmp.eq.s32.totalorder %s22, 0
      %p151 = por %p149, %p150
      %p152 = scmp.ne.s32.totalorder %s140, %s141
      %p153 = scmp.eq.s32.totalorder %s23, 3
      %p154 = por %p152, %p153
      %p156 = scmp.ne.s32.totalorder %s141, %s155
      %p157 = scmp.eq.s32.totalorder %s23, 0
      %p158 = por %p156, %p157
      %s159 = ssub.s32 %s24, %s36
      %p160 = scmp.eq.s32.totalorder %s159, 0
      %s162 = sadd.s32 %s161, 1
      %s163 = scalar_select %p160, %s161, %s162
      %p166 = pneg %p160
      %p167 = scmp.eq.s32.totalorder %s17, 3
      %p168 = por %p166, %p167
      %p169 = scmp.ne.s32.totalorder %s161, %s164
      %p170 = scmp.eq.s32.totalorder %s17, 0
      %p171 = por %p169, %p170
      %p172 = scmp.ne.s32.totalorder %s161, %s164
      %p173 = scmp.eq.s32.totalorder %s22, 3
      %p174 = por %p172, %p173
      %p175 = scmp.ne.s32.totalorder %s164, %s165
      %p176 = scmp.eq.s32.totalorder %s22, 0
      %p177 = por %p175, %p176
      %p178 = scmp.ne.s32.totalorder %s164, %s165
      %p179 = scmp.eq.s32.totalorder %s23, 3
      %p180 = por %p178, %p179
      %p182 = scmp.ne.s32.totalorder %s165, %s181
      %p183 = scmp.eq.s32.totalorder %s23, 0
      %p184 = por %p182, %p183
      %p185 = scmp.le.s32.totalorder 1, %s17
      %p186 = scmp.lt.s32.totalorder %s17, 5
      %p187 = pnand %p185, %p186
      %p188 = pneg %p187
      // Predicated region
      $region9: #{tpu_custom_call.1} parent=5 // pred_check
        _
      $region10: #{tpu_custom_call.1} parent=5 // pred_check_branch
        %190 = sbr.rel (%p187) target = $region12
      $region11: #{tpu_custom_call.1} parent=5 // pred_region
        %s191 = ssub.s32 %s17, 1
        // Predicated region
        $region13: #{tpu_custom_call.1} parent=11 // pred_check
          %p192 = pneg %p130
        $region14: #{tpu_custom_call.1} parent=11 // pred_check_branch
          %194 = sbr.rel (%p192) target = $region16
        $region15: #{tpu_custom_call.1} parent=11 // pred_region
          _
        $region16: #{tpu_custom_call.1} parent=11 // pred_fallthru
          _
        // Predicated region
        $region17: #{tpu_custom_call.1} parent=11 // pred_check
          %p195 = pneg %p151
        $region18: #{tpu_custom_call.1} parent=11 // pred_check_branch
          %197 = sbr.rel (%p195) target = $region20
        $region19: #{tpu_custom_call.1} parent=11 // pred_region
          _
        $region20: #{tpu_custom_call.1} parent=11 // pred_fallthru
          _
      $region12: #{tpu_custom_call.1} parent=5 // pred_fallthru
        _
      %p198 = scmp.lt.s32.totalorder %s17, 4
      // Predicated region
      $region21: #{tpu_custom_call.1} parent=5 // pred_check
        %p199 = pneg %p198
      $region22: #{tpu_custom_call.1} parent=5 // pred_check_branch
        %201 = sbr.rel (%p199) target = $region24
      $region23: #{tpu_custom_call.1} parent=5 // pred_region
        // Predicated region
        $region25: #{tpu_custom_call.1} parent=23 // pred_check
          %p202 = pneg %p51
        $region26: #{tpu_custom_call.1} parent=23 // pred_check_branch
          %204 = sbr.rel (%p202) target = $region28
        $region27: #{tpu_custom_call.1} parent=23 // pred_region
          #allocation9 [shape = 'u32[6]{0}', space=smem, size = 0x18, scoped, tag = 'DMA stride descriptor']
          %s205 = sand.u32 %s41, 1
          %s206 = scalar_lea.sflag [#allocation5], %s205
          %s207 = sand.u32 %s41, 1
          %s208 = smul.addr %s207, 128
          %s209 = scalar_lea.vmem [#allocation4], %s208
          %s210 = smul.u32 16, %s24
          %s212 = ssub.s32 2048, 2048
          %213 = vsyncadd %s206, %s212
          %s214 = smul.addr %s210, 2
          %s215 = sadd.s32 %s25, %s214
          %s216 = smul.addr %s215, 64
          %s217 = scalar_lea.hbm %s0, %s216
          %s219 = sshll.u32 1, 14
          %s220 = sxor.u32 4294967295, %s219
          %s222 = sld [smem:[#allocation0]]
          %s223 = sadd.s32 2, %s222
          %s225 = sshll.u32 7, 26
          %s226 = sxor.u32 4294967295, %s225
          %s227 = sand.u32 0, %s226
          %s228 = sshll.u32 %s223, 26
          %s229 = sor.u32 %s227, %s228
          %s230 = sshll.u32 %s209, 4
          %s231 = int_to_ptr.vmem [resolvable:$true] %s230
          %237 = sst [smem:[#allocation9]] 4096
          %s238 = scalar_lea.smem [#allocation9], 1
          %239 = sst [smem:[%s238]] 1024
          %s240 = scalar_lea.smem [#allocation9], 2
          %241 = sst [smem:[%s240]] 16
          %s242 = scalar_lea.smem [#allocation9], 3
          %243 = sst [smem:[%s242]] 128
          %s244 = scalar_lea.smem [#allocation9], 4
          %245 = sst [smem:[%s244]] 64
          %s246 = scalar_lea.smem [#allocation9], 5
          %247 = sst [smem:[%s246]] 4
          %249 = dma.general %s217, 2048, %s231, %s206, [#allocation8], [#allocation9], %s229, 0
        $region28: #{tpu_custom_call.1} parent=23 // pred_fallthru
          _
        // Predicated region
        $region29: #{tpu_custom_call.1} parent=23 // pred_check
          %p250 = pneg %p77
        $region30: #{tpu_custom_call.1} parent=23 // pred_check_branch
          %252 = sbr.rel (%p250) target = $region32
        $region31: #{tpu_custom_call.1} parent=23 // pred_region
          %s253 = smul.u32 16, %s25
          %p254 = scmp.lt.s32.totalorder %s253, 31
          %s255 = scalar_select %p254, %s253, 31
          %s256 = smul.addr %s255, 4
          %s257 = scalar_lea.vmem %s1, %s256
          %s258 = smul.u32 16, %s25
        $region32: #{tpu_custom_call.1} parent=23 // pred_fallthru
          _
        // Predicated region
        $region33: #{tpu_custom_call.1} parent=23 // pred_check
          %p259 = pneg %p103
        $region34: #{tpu_custom_call.1} parent=23 // pred_check_branch
          %261 = sbr.rel (%p259) target = $region36
        $region35: #{tpu_custom_call.1} parent=23 // pred_region
          %s262 = smul.u32 16, %s24
          %p263 = scmp.lt.s32.totalorder %s262, 31
          %s264 = scalar_select %p263, %s262, 31
          %s265 = smul.addr %s264, 4
          %s266 = scalar_lea.vmem %s2, %s265
          %s267 = smul.u32 16, %s24
        $region36: #{tpu_custom_call.1} parent=23 // pred_fallthru
          _
      $region24: #{tpu_custom_call.1} parent=5 // pred_fallthru
        _
      %p268 = scmp.le.s32.totalorder 1, %s17
      %p269 = scmp.lt.s32.totalorder %s17, 5
      %p270 = pnand %p268, %p269
      %p271 = pneg %p270
      // Predicated region
      $region37: #{tpu_custom_call.1} parent=5 // pred_check
        _
      $region38: #{tpu_custom_call.1} parent=5 // pred_check_branch
        %273 = sbr.rel (%p270) target = $region40
      $region39: #{tpu_custom_call.1} parent=5 // pred_region
        %s274 = ssub.s32 %s17, 1
        %s275 = sand.u32 %s44, 1
        %s276 = scalar_lea.sflag [#allocation5], %s275
        %s277 = sand.u32 %s44, 1
        %s278 = smul.addr %s277, 128
        %s279 = scalar_lea.vmem [#allocation4], %s278
        // Predicated region
        $region41: #{tpu_custom_call.1} parent=39 // pred_check
          %p280 = pneg %p57
        $region42: #{tpu_custom_call.1} parent=39 // pred_check_branch
          %282 = sbr.rel (%p280) target = $region44
        $region43: #{tpu_custom_call.1} parent=39 // pred_region
          %283 = dma.done %s276, 2048
        $region44: #{tpu_custom_call.1} parent=39 // pred_fallthru
          _
        %s284 = sand.u32 %s44, 1
        %s285 = scalar_lea.sflag [#allocation5], %s284
        %s286 = sand.u32 %s44, 1
        %s287 = smul.addr %s286, 128
        %s288 = scalar_lea.vmem [#allocation4], %s287
        %p289 = pneg %p57
        %p290 = pneg %p54
        %s291 = smul.u32 16, %s27
        %p292 = scmp.lt.s32.totalorder %s291, 31
        %s293 = scalar_select %p292, %s291, 31
        %s294 = smul.addr %s293, 4
        %s295 = scalar_lea.vmem %s1, %s294
        %p296 = pneg %p83
        %p297 = pneg %p80
        %s298 = smul.u32 16, %s26
        %p299 = scmp.lt.s32.totalorder %s298, 31
        %s300 = scalar_select %p299, %s298, 31
        %s301 = smul.addr %s300, 4
        %s302 = scalar_lea.vmem %s2, %s301
        %p303 = pneg %p109
        %p304 = pneg %p106
        %p305 = pneg %p130
        %p306 = pneg %p127
        %p307 = pneg %p151
        %p308 = pneg %p148
        %p309 = pneg %p177
        %p310 = pneg %p174
        %s311 = sand.u32 %s164, 1
        %s312 = scalar_lea.sflag [#allocation6], %s311
        %s313 = sand.u32 %s164, 1
        %s314 = smul.addr %s313, 128
        %s315 = scalar_lea.vmem [#allocation7], %s314
        %s316 = smul.u32 16, %s26
        %s317 = smul.u32 16, %s27
        %p318 = scmp.lt.s32.totalorder %s317, 31
        %s319 = scalar_select %p318, %s317, 31
        %s320 = smul.addr %s319, 4
        %s321 = scalar_lea.vmem %s1, %s320
        %s322 = smul.u32 16, %s27
        %s323 = smul.u32 16, %s26
        %p324 = scmp.lt.s32.totalorder %s323, 31
        %s325 = scalar_select %p324, %s323, 31
        %s326 = smul.addr %s325, 4
        %s327 = scalar_lea.vmem %s2, %s326
        %s328 = smul.u32 16, %s26
        %s329 = smul.u32 16, %s26
        %p331 = scmp.eq.s32.totalorder %s27, 0
        // Predicated region
        $region45: #{tpu_custom_call.1} parent=39 // pred_check
          %p332 = pneg %p331
        $region46: #{tpu_custom_call.1} parent=39 // pred_check_branch
          %334 = sbr.rel (%p332) target = $region48
        $region47: #{tpu_custom_call.1} parent=39 // pred_region
          %vm335 = vcmask 261120
          %336 = vst.msk [vmem:[#allocation2] sm:$0xff] %vm335, 0.0
          %337 = vst.msk [vmem:[#allocation2 + $0x8] sm:$0xff] %vm335, 0.0
          %338 = vst.msk [vmem:[#allocation2 + $0x10] sm:$0xff] %vm335, 0.0
          %339 = vst.msk [vmem:[#allocation2 + $0x18] sm:$0xff] %vm335, 0.0
          %340 = vst.msk [vmem:[#allocation2 + $0x20] sm:$0xff] %vm335, 0.0
          %341 = vst.msk [vmem:[#allocation2 + $0x28] sm:$0xff] %vm335, 0.0
          %342 = vst.msk [vmem:[#allocation2 + $0x30] sm:$0xff] %vm335, 0.0
          %343 = vst.msk [vmem:[#allocation2 + $0x38] sm:$0xff] %vm335, 0.0
          %344 = vst.msk [vmem:[#allocation2 + $0x40] sm:$0xff] %vm335, 0.0
          %345 = vst.msk [vmem:[#allocation2 + $0x48] sm:$0xff] %vm335, 0.0
          %346 = vst.msk [vmem:[#allocation2 + $0x50] sm:$0xff] %vm335, 0.0
          %347 = vst.msk [vmem:[#allocation2 + $0x58] sm:$0xff] %vm335, 0.0
          %348 = vst.msk [vmem:[#allocation2 + $0x60] sm:$0xff] %vm335, 0.0
          %349 = vst.msk [vmem:[#allocation2 + $0x68] sm:$0xff] %vm335, 0.0
          %350 = vst.msk [vmem:[#allocation2 + $0x70] sm:$0xff] %vm335, 0.0
          %351 = vst.msk [vmem:[#allocation2 + $0x78] sm:$0xff] %vm335, 0.0
          %352 = vst.msk [vmem:[#allocation3] sm:$0xff] %vm335, 0.0
          %353 = vst.msk [vmem:[#allocation3 + $0x8] sm:$0xff] %vm335, 0.0
          %354 = vst.msk [vmem:[#allocation3 + $0x10] sm:$0xff] %vm335, 0.0
          %355 = vst.msk [vmem:[#allocation3 + $0x18] sm:$0xff] %vm335, 0.0
          %356 = vst.msk [vmem:[#allocation3 + $0x20] sm:$0xff] %vm335, 0.0
          %357 = vst.msk [vmem:[#allocation3 + $0x28] sm:$0xff] %vm335, 0.0
          %358 = vst.msk [vmem:[#allocation3 + $0x30] sm:$0xff] %vm335, 0.0
          %359 = vst.msk [vmem:[#allocation3 + $0x38] sm:$0xff] %vm335, 0.0
          %360 = vst.msk [vmem:[#allocation3 + $0x40] sm:$0xff] %vm335, 0.0
          %361 = vst.msk [vmem:[#allocation3 + $0x48] sm:$0xff] %vm335, 0.0
          %362 = vst.msk [vmem:[#allocation3 + $0x50] sm:$0xff] %vm335, 0.0
          %363 = vst.msk [vmem:[#allocation3 + $0x58] sm:$0xff] %vm335, 0.0
          %364 = vst.msk [vmem:[#allocation3 + $0x60] sm:$0xff] %vm335, 0.0
          %365 = vst.msk [vmem:[#allocation3 + $0x68] sm:$0xff] %vm335, 0.0
          %366 = vst.msk [vmem:[#allocation3 + $0x70] sm:$0xff] %vm335, 0.0
          %367 = vst.msk [vmem:[#allocation3 + $0x78] sm:$0xff] %vm335, 0.0
        $region48: #{tpu_custom_call.1} parent=39 // pred_fallthru
          _
        %v368 = vld [vmem:[%s321] sm:$0xf]
        %v369 = vld [vmem:[%s321 + $0x4] sm:$0xf]
        %v370 = vld [vmem:[%s321 + $0x8] sm:$0xf]
        %v371 = vld [vmem:[%s321 + $0xc] sm:$0xf]
        %v372 = vld [vmem:[%s321 + $0x10] sm:$0xf]
        %v373 = vld [vmem:[%s321 + $0x14] sm:$0xf]
        %v374 = vld [vmem:[%s321 + $0x18] sm:$0xf]
        %v375 = vld [vmem:[%s321 + $0x1c] sm:$0xf]
        %v376 = vld [vmem:[%s321 + $0x20] sm:$0xf]
        %v377 = vld [vmem:[%s321 + $0x24] sm:$0xf]
        %v378 = vld [vmem:[%s321 + $0x28] sm:$0xf]
        %v379 = vld [vmem:[%s321 + $0x2c] sm:$0xf]
        %v380 = vld [vmem:[%s321 + $0x30] sm:$0xf]
        %v381 = vld [vmem:[%s321 + $0x34] sm:$0xf]
        %v382 = vld [vmem:[%s321 + $0x38] sm:$0xf]
        %v383 = vld [vmem:[%s321 + $0x3c] sm:$0xf]
        %v384 = vld [vmem:[#allocation2] sm:$0xff]
        %v385 = vld [vmem:[#allocation2 + $0x8] sm:$0xff]
        %v386 = vld [vmem:[#allocation2 + $0x10] sm:$0xff]
        %v387 = vld [vmem:[#allocation2 + $0x18] sm:$0xff]
        %v388 = vld [vmem:[#allocation2 + $0x20] sm:$0xff]
        %v389 = vld [vmem:[#allocation2 + $0x28] sm:$0xff]
        %v390 = vld [vmem:[#allocation2 + $0x30] sm:$0xff]
        %v391 = vld [vmem:[#allocation2 + $0x38] sm:$0xff]
        %v392 = vld [vmem:[#allocation2 + $0x40] sm:$0xff]
        %v393 = vld [vmem:[#allocation2 + $0x48] sm:$0xff]
        %v394 = vld [vmem:[#allocation2 + $0x50] sm:$0xff]
        %v395 = vld [vmem:[#allocation2 + $0x58] sm:$0xff]
        %v396 = vld [vmem:[#allocation2 + $0x60] sm:$0xff]
        %v397 = vld [vmem:[#allocation2 + $0x68] sm:$0xff]
        %v398 = vld [vmem:[#allocation2 + $0x70] sm:$0xff]
        %v399 = vld [vmem:[#allocation2 + $0x78] sm:$0xff]
        %v400 = vld [vmem:[%s279] sm:$0xf]
        %v401 = vld [vmem:[%s279 + $0x4] sm:$0xf]
        %v402 = vld [vmem:[%s279 + $0x8] sm:$0xf]
        %v403 = vld [vmem:[%s279 + $0xc] sm:$0xf]
        %v404 = vld [vmem:[%s279 + $0x10] sm:$0xf]
        %v405 = vld [vmem:[%s279 + $0x14] sm:$0xf]
        %v406 = vld [vmem:[%s279 + $0x18] sm:$0xf]
        %v407 = vld [vmem:[%s279 + $0x1c] sm:$0xf]
        %v408 = vld [vmem:[%s279 + $0x20] sm:$0xf]
        %v409 = vld [vmem:[%s279 + $0x24] sm:$0xf]
        %v410 = vld [vmem:[%s279 + $0x28] sm:$0xf]
        %v411 = vld [vmem:[%s279 + $0x2c] sm:$0xf]
        %v412 = vld [vmem:[%s279 + $0x30] sm:$0xf]
        %v413 = vld [vmem:[%s279 + $0x34] sm:$0xf]
        %v414 = vld [vmem:[%s279 + $0x38] sm:$0xf]
        %v415 = vld [vmem:[%s279 + $0x3c] sm:$0xf]
        %v432 = vunpack.c.l.b16 %v400
        %v433 = vunpack.c.l.b16 %v401
        %v434 = vunpack.c.l.b16 %v402
        %v435 = vunpack.c.l.b16 %v403
        %v436 = vunpack.c.l.b16 %v404
        %v437 = vunpack.c.l.b16 %v405
        %v438 = vunpack.c.l.b16 %v406
        %v439 = vunpack.c.l.b16 %v407
        %v440 = vunpack.c.l.b16 %v408
        %v441 = vunpack.c.l.b16 %v409
        %v442 = vunpack.c.l.b16 %v410
        %v443 = vunpack.c.l.b16 %v411
        %v444 = vunpack.c.l.b16 %v412
        %v445 = vunpack.c.l.b16 %v413
        %v446 = vunpack.c.l.b16 %v414
        %v447 = vunpack.c.l.b16 %v415
        %v448 = vpack.c.b16 %v433, %v432
        %v449 = vpack.c.b16 %v435, %v434
        %v450 = vpack.c.b16 %v437, %v436
        %v451 = vpack.c.b16 %v439, %v438
        %v452 = vpack.c.b16 %v441, %v440
        %v453 = vpack.c.b16 %v443, %v442
        %v454 = vpack.c.b16 %v445, %v444
        %v455 = vpack.c.b16 %v447, %v446
        %v480 = vunpack.c.l.b16 %v368
        %v481 = vunpack.c.l.b16 %v369
        %v482 = vunpack.c.l.b16 %v370
        %v483 = vunpack.c.l.b16 %v371
        %v484 = vunpack.c.l.b16 %v372
        %v485 = vunpack.c.l.b16 %v373
        %v486 = vunpack.c.l.b16 %v374
        %v487 = vunpack.c.l.b16 %v375
        %v488 = vunpack.c.l.b16 %v376
        %v489 = vunpack.c.l.b16 %v377
        %v490 = vunpack.c.l.b16 %v378
        %v491 = vunpack.c.l.b16 %v379
        %v492 = vunpack.c.l.b16 %v380
        %v493 = vunpack.c.l.b16 %v381
        %v494 = vunpack.c.l.b16 %v382
        %v495 = vunpack.c.l.b16 %v383
        %v496 = vpack.c.b16 %v481, %v480
        %v497 = vpack.c.b16 %v483, %v482
        %v498 = vpack.c.b16 %v485, %v484
        %v499 = vpack.c.b16 %v487, %v486
        %v500 = vpack.c.b16 %v489, %v488
        %v501 = vpack.c.b16 %v491, %v490
        %v502 = vpack.c.b16 %v493, %v492
        %v503 = vpack.c.b16 %v495, %v494
        %512 = vmatprep.subr.bf16.mxu0 0
        %513 = vmatpush1.bf16.msra.mxu0 %v496
        %514 = vmatprep.subr.bf16.mxu0 0
        %515 = vmatpush1.bf16.msra.mxu0 %v497
        %516 = vmatprep.subr.bf16.mxu0 0
        %517 = vmatpush1.bf16.msra.mxu0 %v498
        %518 = vmatprep.subr.bf16.mxu0 0
        %519 = vmatpush1.bf16.msra.mxu0 %v499
        %520 = vmatprep.subr.bf16.mxu0 0
        %521 = vmatpush1.bf16.msra.mxu0 %v500
        %522 = vmatprep.subr.bf16.mxu0 0
        %523 = vmatpush1.bf16.msra.mxu0 %v501
        %524 = vmatprep.subr.bf16.mxu0 0
        %525 = vmatpush1.bf16.msra.mxu0 %v502
        %526 = vmatprep.subr.bf16.mxu0 0
        %527 = vmatpush1.bf16.msra.mxu0 %v503
        %528 = vmatprep.subr.bf16.mxu0 0
        %529 = vmatpush1.bf16.msra.mxu0 0
        %530 = vmatprep.subr.bf16.mxu0 0
        %531 = vmatpush1.bf16.msra.mxu0 0
        %532 = vmatprep.subr.bf16.mxu0 0
        %533 = vmatpush1.bf16.msra.mxu0 0
        %534 = vmatprep.subr.bf16.mxu0 0
        %535 = vmatpush1.bf16.msra.mxu0 0
        %536 = vmatprep.subr.bf16.mxu0 0
        %537 = vmatpush1.bf16.msra.mxu0 0
        %538 = vmatprep.subr.bf16.mxu0 0
        %539 = vmatpush1.bf16.msra.mxu0 0
        %540 = vmatprep.subr.bf16.mxu0 0
        %541 = vmatpush1.bf16.msra.mxu0 0
        %542 = vmatprep.subr.bf16.mxu0 0
        %543 = vmatpush1.bf16.msra.mxu0 0
        %544 = vmatprep.mubr.bf16.mxu0 0
        %545 = vmatmul.mubr.bf16.gmra.mrb[0].mxu0 %v448
        %v546 = vpop.f32.mrb[0].mxu0
        %v547 = vadd.f32 0.0, %v546
        %v548 = vpop.f32.mrb[0].mxu0
        %v549 = vpop.f32.mrb[0].mxu0
        %v550 = vadd.f32 0.0, %v549
        %v551 = vpop.f32.mrb[0].mxu0
        %552 = vmatprep.mubr.bf16.mxu0 0
        %553 = vmatmul.mubr.bf16.gmra.mrb[0].mxu0 %v449
        %v554 = vpop.f32.mrb[0].mxu0
        %v555 = vadd.f32 0.0, %v554
        %v556 = vpop.f32.mrb[0].mxu0
        %v557 = vpop.f32.mrb[0].mxu0
        %v558 = vadd.f32 0.0, %v557
        %v559 = vpop.f32.mrb[0].mxu0
        %560 = vmatprep.mubr.bf16.mxu0 0
        %561 = vmatmul.mubr.bf16.gmra.mrb[0].mxu0 %v450
        %v562 = vpop.f32.mrb[0].mxu0
        %v563 = vadd.f32 0.0, %v562
        %v564 = vpop.f32.mrb[0].mxu0
        %v565 = vpop.f32.mrb[0].mxu0
        %v566 = vadd.f32 0.0, %v565
        %v567 = vpop.f32.mrb[0].mxu0
        %568 = vmatprep.mubr.bf16.mxu0 0
        %569 = vmatmul.mubr.bf16.gmra.mrb[0].mxu0 %v451
        %v570 = vpop.f32.mrb[0].mxu0
        %v571 = vadd.f32 0.0, %v570
        %v572 = vpop.f32.mrb[0].mxu0
        %v573 = vpop.f32.mrb[0].mxu0
        %v574 = vadd.f32 0.0, %v573
        %v575 = vpop.f32.mrb[0].mxu0
        %576 = vmatprep.mubr.bf16.mxu0 0
        %577 = vmatmul.mubr.bf16.gmra.mrb[0].mxu0 %v452
        %v578 = vpop.f32.mrb[0].mxu0
        %v579 = vadd.f32 0.0, %v578
        %v580 = vpop.f32.mrb[0].mxu0
        %v581 = vpop.f32.mrb[0].mxu0
        %v582 = vadd.f32 0.0, %v581
        %v583 = vpop.f32.mrb[0].mxu0
        %584 = vmatprep.mubr.bf16.mxu0 0
        %585 = vmatmul.mubr.bf16.gmra.mrb[0].mxu0 %v453
        %v586 = vpop.f32.mrb[0].mxu0
        %v587 = vadd.f32 0.0, %v586
        %v588 = vpop.f32.mrb[0].mxu0
        %v589 = vpop.f32.mrb[0].mxu0
        %v590 = vadd.f32 0.0, %v589
        %v591 = vpop.f32.mrb[0].mxu0
        %592 = vmatprep.mubr.bf16.mxu0 0
        %593 = vmatmul.mubr.bf16.gmra.mrb[0].mxu0 %v454
        %v594 = vpop.f32.mrb[0].mxu0
        %v595 = vadd.f32 0.0, %v594
        %v596 = vpop.f32.mrb[0].mxu0
        %v597 = vpop.f32.mrb[0].mxu0
        %v598 = vadd.f32 0.0, %v597
        %v599 = vpop.f32.mrb[0].mxu0
        %600 = vmatprep.mubr.bf16.mxu0 0
        %601 = vmatmul.mubr.bf16.gmra.mrb[0].mxu0 %v455
        %v602 = vpop.f32.mrb[0].mxu0
        %v603 = vadd.f32 0.0, %v602
        %v604 = vpop.f32.mrb[0].mxu0
        %v605 = vpop.f32.mrb[0].mxu0
        %v606 = vadd.f32 0.0, %v605
        %v607 = vpop.f32.mrb[0].mxu0
        %608 = vdwg.mxu0
        %v609 = vadd.f32 %v384, %v547
        %v610 = vadd.f32 %v385, %v550
        %v611 = vadd.f32 %v386, %v555
        %v612 = vadd.f32 %v387, %v558
        %v613 = vadd.f32 %v388, %v563
        %v614 = vadd.f32 %v389, %v566
        %v615 = vadd.f32 %v390, %v571
        %v616 = vadd.f32 %v391, %v574
        %v617 = vadd.f32 %v392, %v579
        %v618 = vadd.f32 %v393, %v582
        %v619 = vadd.f32 %v394, %v587
        %v620 = vadd.f32 %v395, %v590
        %v621 = vadd.f32 %v396, %v595
        %v622 = vadd.f32 %v397, %v598
        %v623 = vadd.f32 %v398, %v603
        %v624 = vadd.f32 %v399, %v606
        %vm625 = vcmask 261120
        %626 = vst.msk [vmem:[#allocation2] sm:$0xff] %vm625, %v609
        %627 = vst.msk [vmem:[#allocation2 + $0x8] sm:$0xff] %vm625, %v610
        %628 = vst.msk [vmem:[#allocation2 + $0x10] sm:$0xff] %vm625, %v611
        %629 = vst.msk [vmem:[#allocation2 + $0x18] sm:$0xff] %vm625, %v612
        %630 = vst.msk [vmem:[#allocation2 + $0x20] sm:$0xff] %vm625, %v613
        %631 = vst.msk [vmem:[#allocation2 + $0x28] sm:$0xff] %vm625, %v614
        %632 = vst.msk [vmem:[#allocation2 + $0x30] sm:$0xff] %vm625, %v615
        %633 = vst.msk [vmem:[#allocation2 + $0x38] sm:$0xff] %vm625, %v616
        %634 = vst.msk [vmem:[#allocation2 + $0x40] sm:$0xff] %vm625, %v617
        %635 = vst.msk [vmem:[#allocation2 + $0x48] sm:$0xff] %vm625, %v618
        %636 = vst.msk [vmem:[#allocation2 + $0x50] sm:$0xff] %vm625, %v619
        %637 = vst.msk [vmem:[#allocation2 + $0x58] sm:$0xff] %vm625, %v620
        %638 = vst.msk [vmem:[#allocation2 + $0x60] sm:$0xff] %vm625, %v621
        %639 = vst.msk [vmem:[#allocation2 + $0x68] sm:$0xff] %vm625, %v622
        %640 = vst.msk [vmem:[#allocation2 + $0x70] sm:$0xff] %vm625, %v623
        %641 = vst.msk [vmem:[#allocation2 + $0x78] sm:$0xff] %vm625, %v624
        %v642 = vld [vmem:[#allocation3] sm:$0xff]
        %v643 = vld [vmem:[#allocation3 + $0x8] sm:$0xff]
        %v644 = vld [vmem:[#allocation3 + $0x10] sm:$0xff]
        %v645 = vld [vmem:[#allocation3 + $0x18] sm:$0xff]
        %v646 = vld [vmem:[#allocation3 + $0x20] sm:$0xff]
        %v647 = vld [vmem:[#allocation3 + $0x28] sm:$0xff]
        %v648 = vld [vmem:[#allocation3 + $0x30] sm:$0xff]
        %v649 = vld [vmem:[#allocation3 + $0x38] sm:$0xff]
        %v650 = vld [vmem:[#allocation3 + $0x40] sm:$0xff]
        %v651 = vld [vmem:[#allocation3 + $0x48] sm:$0xff]
        %v652 = vld [vmem:[#allocation3 + $0x50] sm:$0xff]
        %v653 = vld [vmem:[#allocation3 + $0x58] sm:$0xff]
        %v654 = vld [vmem:[#allocation3 + $0x60] sm:$0xff]
        %v655 = vld [vmem:[#allocation3 + $0x68] sm:$0xff]
        %v656 = vld [vmem:[#allocation3 + $0x70] sm:$0xff]
        %v657 = vld [vmem:[#allocation3 + $0x78] sm:$0xff]
        %s658 = scalar_lea.vmem %s279, 64 [#allocation4]
        %v659 = vld [vmem:[%s658] sm:$0xf]
        %v660 = vld [vmem:[%s658 + $0x4] sm:$0xf]
        %v661 = vld [vmem:[%s658 + $0x8] sm:$0xf]
        %v662 = vld [vmem:[%s658 + $0xc] sm:$0xf]
        %v663 = vld [vmem:[%s658 + $0x10] sm:$0xf]
        %v664 = vld [vmem:[%s658 + $0x14] sm:$0xf]
        %v665 = vld [vmem:[%s658 + $0x18] sm:$0xf]
        %v666 = vld [vmem:[%s658 + $0x1c] sm:$0xf]
        %v667 = vld [vmem:[%s658 + $0x20] sm:$0xf]
        %v668 = vld [vmem:[%s658 + $0x24] sm:$0xf]
        %v669 = vld [vmem:[%s658 + $0x28] sm:$0xf]
        %v670 = vld [vmem:[%s658 + $0x2c] sm:$0xf]
        %v671 = vld [vmem:[%s658 + $0x30] sm:$0xf]
        %v672 = vld [vmem:[%s658 + $0x34] sm:$0xf]
        %v673 = vld [vmem:[%s658 + $0x38] sm:$0xf]
        %v674 = vld [vmem:[%s658 + $0x3c] sm:$0xf]
        %v691 = vunpack.c.l.b16 %v659
        %v692 = vunpack.c.l.b16 %v660
        %v693 = vunpack.c.l.b16 %v661
        %v694 = vunpack.c.l.b16 %v662
        %v695 = vunpack.c.l.b16 %v663
        %v696 = vunpack.c.l.b16 %v664
        %v697 = vunpack.c.l.b16 %v665
        %v698 = vunpack.c.l.b16 %v666
        %v699 = vunpack.c.l.b16 %v667
        %v700 = vunpack.c.l.b16 %v668
        %v701 = vunpack.c.l.b16 %v669
        %v702 = vunpack.c.l.b16 %v670
        %v703 = vunpack.c.l.b16 %v671
        %v704 = vunpack.c.l.b16 %v672
        %v705 = vunpack.c.l.b16 %v673
        %v706 = vunpack.c.l.b16 %v674
        %v707 = vpack.c.b16 %v692, %v691
        %v708 = vpack.c.b16 %v694, %v693
        %v709 = vpack.c.b16 %v696, %v695
        %v710 = vpack.c.b16 %v698, %v697
        %v711 = vpack.c.b16 %v700, %v699
        %v712 = vpack.c.b16 %v702, %v701
        %v713 = vpack.c.b16 %v704, %v703
        %v714 = vpack.c.b16 %v706, %v705
        %723 = vmatprep.subr.bf16.mxu0 0
        %724 = vmatpush1.bf16.msra.mxu0 %v496
        %725 = vmatprep.subr.bf16.mxu0 0
        %726 = vmatpush1.bf16.msra.mxu0 %v497
        %727 = vmatprep.subr.bf16.mxu0 0
        %728 = vmatpush1.bf16.msra.mxu0 %v498
        %729 = vmatprep.subr.bf16.mxu0 0
        %730 = vmatpush1.bf16.msra.mxu0 %v499
        %731 = vmatprep.subr.bf16.mxu0 0
        %732 = vmatpush1.bf16.msra.mxu0 %v500
        %733 = vmatprep.subr.bf16.mxu0 0
        %734 = vmatpush1.bf16.msra.mxu0 %v501
        %735 = vmatprep.subr.bf16.mxu0 0
        %736 = vmatpush1.bf16.msra.mxu0 %v502
        %737 = vmatprep.subr.bf16.mxu0 0
        %738 = vmatpush1.bf16.msra.mxu0 %v503
        %739 = vmatprep.subr.bf16.mxu0 0
        %740 = vmatpush1.bf16.msra.mxu0 0
        %741 = vmatprep.subr.bf16.mxu0 0
        %742 = vmatpush1.bf16.msra.mxu0 0
        %743 = vmatprep.subr.bf16.mxu0 0
        %744 = vmatpush1.bf16.msra.mxu0 0
        %745 = vmatprep.subr.bf16.mxu0 0
        %746 = vmatpush1.bf16.msra.mxu0 0
        %747 = vmatprep.subr.bf16.mxu0 0
        %748 = vmatpush1.bf16.msra.mxu0 0
        %749 = vmatprep.subr.bf16.mxu0 0
        %750 = vmatpush1.bf16.msra.mxu0 0
        %751 = vmatprep.subr.bf16.mxu0 0
        %752 = vmatpush1.bf16.msra.mxu0 0
        %753 = vmatprep.subr.bf16.mxu0 0
        %754 = vmatpush1.bf16.msra.mxu0 0
        %755 = vmatprep.mubr.bf16.mxu0 0
        %756 = vmatmul.mubr.bf16.gmra.mrb[0].mxu0 %v707
        %v757 = vpop.f32.mrb[0].mxu0
        %v758 = vadd.f32 0.0, %v757
        %v759 = vpop.f32.mrb[0].mxu0
        %v760 = vpop.f32.mrb[0].mxu0
        %v761 = vadd.f32 0.0, %v760
        %v762 = vpop.f32.mrb[0].mxu0
        %763 = vmatprep.mubr.bf16.mxu0 0
        %764 = vmatmul.mubr.bf16.gmra.mrb[0].mxu0 %v708
        %v765 = vpop.f32.mrb[0].mxu0
        %v766 = vadd.f32 0.0, %v765
        %v767 = vpop.f32.mrb[0].mxu0
        %v768 = vpop.f32.mrb[0].mxu0
        %v769 = vadd.f32 0.0, %v768
        %v770 = vpop.f32.mrb[0].mxu0
        %771 = vmatprep.mubr.bf16.mxu0 0
        %772 = vmatmul.mubr.bf16.gmra.mrb[0].mxu0 %v709
        %v773 = vpop.f32.mrb[0].mxu0
        %v774 = vadd.f32 0.0, %v773
        %v775 = vpop.f32.mrb[0].mxu0
        %v776 = vpop.f32.mrb[0].mxu0
        %v777 = vadd.f32 0.0, %v776
        %v778 = vpop.f32.mrb[0].mxu0
        %779 = vmatprep.mubr.bf16.mxu0 0
        %780 = vmatmul.mubr.bf16.gmra.mrb[0].mxu0 %v710
        %v781 = vpop.f32.mrb[0].mxu0
        %v782 = vadd.f32 0.0, %v781
        %v783 = vpop.f32.mrb[0].mxu0
        %v784 = vpop.f32.mrb[0].mxu0
        %v785 = vadd.f32 0.0, %v784
        %v786 = vpop.f32.mrb[0].mxu0
        %787 = vmatprep.mubr.bf16.mxu0 0
        %788 = vmatmul.mubr.bf16.gmra.mrb[0].mxu0 %v711
        %v789 = vpop.f32.mrb[0].mxu0
        %v790 = vadd.f32 0.0, %v789
        %v791 = vpop.f32.mrb[0].mxu0
        %v792 = vpop.f32.mrb[0].mxu0
        %v793 = vadd.f32 0.0, %v792
        %v794 = vpop.f32.mrb[0].mxu0
        %795 = vmatprep.mubr.bf16.mxu0 0
        %796 = vmatmul.mubr.bf16.gmra.mrb[0].mxu0 %v712
        %v797 = vpop.f32.mrb[0].mxu0
        %v798 = vadd.f32 0.0, %v797
        %v799 = vpop.f32.mrb[0].mxu0
        %v800 = vpop.f32.mrb[0].mxu0
        %v801 = vadd.f32 0.0, %v800
        %v802 = vpop.f32.mrb[0].mxu0
        %803 = vmatprep.mubr.bf16.mxu0 0
        %804 = vmatmul.mubr.bf16.gmra.mrb[0].mxu0 %v713
        %v805 = vpop.f32.mrb[0].mxu0
        %v806 = vadd.f32 0.0, %v805
        %v807 = vpop.f32.mrb[0].mxu0
        %v808 = vpop.f32.mrb[0].mxu0
        %v809 = vadd.f32 0.0, %v808
        %v810 = vpop.f32.mrb[0].mxu0
        %811 = vmatprep.mubr.bf16.mxu0 0
        %812 = vmatmul.mubr.bf16.gmra.mrb[0].mxu0 %v714
        %v813 = vpop.f32.mrb[0].mxu0
        %v814 = vadd.f32 0.0, %v813
        %v815 = vpop.f32.mrb[0].mxu0
        %v816 = vpop.f32.mrb[0].mxu0
        %v817 = vadd.f32 0.0, %v816
        %v818 = vpop.f32.mrb[0].mxu0
        %819 = vdwg.mxu0
        %v820 = vadd.f32 %v642, %v758
        %v821 = vadd.f32 %v643, %v761
        %v822 = vadd.f32 %v644, %v766
        %v823 = vadd.f32 %v645, %v769
        %v824 = vadd.f32 %v646, %v774
        %v825 = vadd.f32 %v647, %v777
        %v826 = vadd.f32 %v648, %v782
        %v827 = vadd.f32 %v649, %v785
        %v828 = vadd.f32 %v650, %v790
        %v829 = vadd.f32 %v651, %v793
        %v830 = vadd.f32 %v652, %v798
        %v831 = vadd.f32 %v653, %v801
        %v832 = vadd.f32 %v654, %v806
        %v833 = vadd.f32 %v655, %v809
        %v834 = vadd.f32 %v656, %v814
        %v835 = vadd.f32 %v657, %v817
        %836 = vst.msk [vmem:[#allocation3] sm:$0xff] %vm625, %v820
        %837 = vst.msk [vmem:[#allocation3 + $0x8] sm:$0xff] %vm625, %v821
        %838 = vst.msk [vmem:[#allocation3 + $0x10] sm:$0xff] %vm625, %v822
        %839 = vst.msk [vmem:[#allocation3 + $0x18] sm:$0xff] %vm625, %v823
        %840 = vst.msk [vmem:[#allocation3 + $0x20] sm:$0xff] %vm625, %v824
        %841 = vst.msk [vmem:[#allocation3 + $0x28] sm:$0xff] %vm625, %v825
        %842 = vst.msk [vmem:[#allocation3 + $0x30] sm:$0xff] %vm625, %v826
        %843 = vst.msk [vmem:[#allocation3 + $0x38] sm:$0xff] %vm625, %v827
        %844 = vst.msk [vmem:[#allocation3 + $0x40] sm:$0xff] %vm625, %v828
        %845 = vst.msk [vmem:[#allocation3 + $0x48] sm:$0xff] %vm625, %v829
        %846 = vst.msk [vmem:[#allocation3 + $0x50] sm:$0xff] %vm625, %v830
        %847 = vst.msk [vmem:[#allocation3 + $0x58] sm:$0xff] %vm625, %v831
        %848 = vst.msk [vmem:[#allocation3 + $0x60] sm:$0xff] %vm625, %v832
        %849 = vst.msk [vmem:[#allocation3 + $0x68] sm:$0xff] %vm625, %v833
        %850 = vst.msk [vmem:[#allocation3 + $0x70] sm:$0xff] %vm625, %v834
        %851 = vst.msk [vmem:[#allocation3 + $0x78] sm:$0xff] %vm625, %v835
        %p852 = scmp.eq.s32.totalorder %s27, 1
        // Predicated region
        $region49: #{tpu_custom_call.1} parent=39 // pred_check
          %p853 = pneg %p852
        $region50: #{tpu_custom_call.1} parent=39 // pred_check_branch
          %855 = sbr.rel (%p853) target = $region52
        $region51: #{tpu_custom_call.1} parent=39 // pred_region
          %v856 = vld [vmem:[%s327] sm:$0xf]
          %v857 = vld [vmem:[%s327 + $0x4] sm:$0xf]
          %v858 = vld [vmem:[%s327 + $0x8] sm:$0xf]
          %v859 = vld [vmem:[%s327 + $0xc] sm:$0xf]
          %v860 = vld [vmem:[%s327 + $0x10] sm:$0xf]
          %v861 = vld [vmem:[%s327 + $0x14] sm:$0xf]
          %v862 = vld [vmem:[%s327 + $0x18] sm:$0xf]
          %v863 = vld [vmem:[%s327 + $0x1c] sm:$0xf]
          %v864 = vld [vmem:[%s327 + $0x20] sm:$0xf]
          %v865 = vld [vmem:[%s327 + $0x24] sm:$0xf]
          %v866 = vld [vmem:[%s327 + $0x28] sm:$0xf]
          %v867 = vld [vmem:[%s327 + $0x2c] sm:$0xf]
          %v868 = vld [vmem:[%s327 + $0x30] sm:$0xf]
          %v869 = vld [vmem:[%s327 + $0x34] sm:$0xf]
          %v870 = vld [vmem:[%s327 + $0x38] sm:$0xf]
          %v871 = vld [vmem:[%s327 + $0x3c] sm:$0xf]
          %v872 = vld [vmem:[#allocation2] sm:$0xff]
          %v873 = vld [vmem:[#allocation2 + $0x8] sm:$0xff]
          %v874 = vld [vmem:[#allocation2 + $0x10] sm:$0xff]
          %v875 = vld [vmem:[#allocation2 + $0x18] sm:$0xff]
          %v876 = vld [vmem:[#allocation2 + $0x20] sm:$0xff]
          %v877 = vld [vmem:[#allocation2 + $0x28] sm:$0xff]
          %v878 = vld [vmem:[#allocation2 + $0x30] sm:$0xff]
          %v879 = vld [vmem:[#allocation2 + $0x38] sm:$0xff]
          %v880 = vld [vmem:[#allocation2 + $0x40] sm:$0xff]
          %v881 = vld [vmem:[#allocation2 + $0x48] sm:$0xff]
          %v882 = vld [vmem:[#allocation2 + $0x50] sm:$0xff]
          %v883 = vld [vmem:[#allocation2 + $0x58] sm:$0xff]
          %v884 = vld [vmem:[#allocation2 + $0x60] sm:$0xff]
          %v885 = vld [vmem:[#allocation2 + $0x68] sm:$0xff]
          %v886 = vld [vmem:[#allocation2 + $0x70] sm:$0xff]
          %v887 = vld [vmem:[#allocation2 + $0x78] sm:$0xff]
          %v888 = vpack.c.bf16 %v873, %v872
          %v889 = vpack.c.bf16 %v875, %v874
          %v890 = vpack.c.bf16 %v877, %v876
          %v891 = vpack.c.bf16 %v879, %v878
          %v892 = vpack.c.bf16 %v881, %v880
          %v893 = vpack.c.bf16 %v883, %v882
          %v894 = vpack.c.bf16 %v885, %v884
          %v895 = vpack.c.bf16 %v887, %v886
          %v896 = vld [vmem:[#allocation3] sm:$0xff]
          %v897 = vld [vmem:[#allocation3 + $0x8] sm:$0xff]
          %v898 = vld [vmem:[#allocation3 + $0x10] sm:$0xff]
          %v899 = vld [vmem:[#allocation3 + $0x18] sm:$0xff]
          %v900 = vld [vmem:[#allocation3 + $0x20] sm:$0xff]
          %v901 = vld [vmem:[#allocation3 + $0x28] sm:$0xff]
          %v902 = vld [vmem:[#allocation3 + $0x30] sm:$0xff]
          %v903 = vld [vmem:[#allocation3 + $0x38] sm:$0xff]
          %v904 = vld [vmem:[#allocation3 + $0x40] sm:$0xff]
          %v905 = vld [vmem:[#allocation3 + $0x48] sm:$0xff]
          %v906 = vld [vmem:[#allocation3 + $0x50] sm:$0xff]
          %v907 = vld [vmem:[#allocation3 + $0x58] sm:$0xff]
          %v908 = vld [vmem:[#allocation3 + $0x60] sm:$0xff]
          %v909 = vld [vmem:[#allocation3 + $0x68] sm:$0xff]
          %v910 = vld [vmem:[#allocation3 + $0x70] sm:$0xff]
          %v911 = vld [vmem:[#allocation3 + $0x78] sm:$0xff]
          %v912 = vpack.c.bf16 %v897, %v896
          %v913 = vpack.c.bf16 %v899, %v898
          %v914 = vpack.c.bf16 %v901, %v900
          %v915 = vpack.c.bf16 %v903, %v902
          %v916 = vpack.c.bf16 %v905, %v904
          %v917 = vpack.c.bf16 %v907, %v906
          %v918 = vpack.c.bf16 %v909, %v908
          %v919 = vpack.c.bf16 %v911, %v910
          %v936 = vunpack.c.l.b16 %v856
          %v937 = vunpack.c.l.b16 %v857
          %v938 = vunpack.c.l.b16 %v858
          %v939 = vunpack.c.l.b16 %v859
          %v940 = vunpack.c.l.b16 %v860
          %v941 = vunpack.c.l.b16 %v861
          %v942 = vunpack.c.l.b16 %v862
          %v943 = vunpack.c.l.b16 %v863
          %v944 = vunpack.c.l.b16 %v864
          %v945 = vunpack.c.l.b16 %v865
          %v946 = vunpack.c.l.b16 %v866
          %v947 = vunpack.c.l.b16 %v867
          %v948 = vunpack.c.l.b16 %v868
          %v949 = vunpack.c.l.b16 %v869
          %v950 = vunpack.c.l.b16 %v870
          %v951 = vunpack.c.l.b16 %v871
          %v952 = vpack.c.b16 %v937, %v936
          %v953 = vpack.c.b16 %v939, %v938
          %v954 = vpack.c.b16 %v941, %v940
          %v955 = vpack.c.b16 %v943, %v942
          %v956 = vpack.c.b16 %v945, %v944
          %v957 = vpack.c.b16 %v947, %v946
          %v958 = vpack.c.b16 %v949, %v948
          %v959 = vpack.c.b16 %v951, %v950
          %968 = vrot.lane.b32.xlu0 %v888, 32
          %v969 = vpop.permute.xlu0 %968
          %970 = vrot.lane.b32.xlu0 %v889, 32
          %v971 = vpop.permute.xlu0 %970
          %972 = vrot.lane.b32.xlu0 %v890, 32
          %v973 = vpop.permute.xlu0 %972
          %974 = vrot.lane.b32.xlu0 %v891, 32
          %v975 = vpop.permute.xlu0 %974
          %976 = vrot.lane.b32.xlu0 %v892, 32
          %v977 = vpop.permute.xlu0 %976
          %978 = vrot.lane.b32.xlu0 %v893, 32
          %v979 = vpop.permute.xlu0 %978
          %980 = vrot.lane.b32.xlu0 %v894, 32
          %v981 = vpop.permute.xlu0 %980
          %982 = vrot.lane.b32.xlu0 %v895, 32
          %v983 = vpop.permute.xlu0 %982
          %992 = vrot.lane.b32.xlu0 %v912, 64
          %v993 = vpop.permute.xlu0 %992
          %994 = vrot.lane.b32.xlu0 %v913, 64
          %v995 = vpop.permute.xlu0 %994
          %996 = vrot.lane.b32.xlu0 %v914, 64
          %v997 = vpop.permute.xlu0 %996
          %998 = vrot.lane.b32.xlu0 %v915, 64
          %v999 = vpop.permute.xlu0 %998
          %1000 = vrot.lane.b32.xlu0 %v916, 64
          %v1001 = vpop.permute.xlu0 %1000
          %1002 = vrot.lane.b32.xlu0 %v917, 64
          %v1003 = vpop.permute.xlu0 %1002
          %1004 = vrot.lane.b32.xlu0 %v918, 64
          %v1005 = vpop.permute.xlu0 %1004
          %1006 = vrot.lane.b32.xlu0 %v919, 64
          %v1007 = vpop.permute.xlu0 %1006
          %v1010 = vsel %vm625, %v952, %v969
          %v1013 = vsel %vm625, %v953, %v971
          %v1016 = vsel %vm625, %v954, %v973
          %v1019 = vsel %vm625, %v955, %v975
          %v1022 = vsel %vm625, %v956, %v977
          %v1025 = vsel %vm625, %v957, %v979
          %v1028 = vsel %vm625, %v958, %v981
          %v1031 = vsel %vm625, %v959, %v983
          %vm1032 = vcmask 523264
          %v1034 = vsel %vm1032, %v1010, %v993
          %v1036 = vsel %vm1032, %v1013, %v995
          %v1038 = vsel %vm1032, %v1016, %v997
          %v1040 = vsel %vm1032, %v1019, %v999
          %v1042 = vsel %vm1032, %v1022, %v1001
          %v1044 = vsel %vm1032, %v1025, %v1003
          %v1046 = vsel %vm1032, %v1028, %v1005
          %v1048 = vsel %vm1032, %v1031, %v1007
          %v1049 = vld [vmem:[%s3] sm:$0xf]
          %v1050 = vld [vmem:[%s3 + $0x4] sm:$0xf]
          %v1051 = vld [vmem:[%s3 + $0x8] sm:$0xf]
          %v1052 = vld [vmem:[%s3 + $0xc] sm:$0xf]
          %v1053 = vld [vmem:[%s3 + $0x10] sm:$0xf]
          %v1054 = vld [vmem:[%s3 + $0x14] sm:$0xf]
          %v1055 = vld [vmem:[%s3 + $0x18] sm:$0xf]
          %v1056 = vld [vmem:[%s3 + $0x1c] sm:$0xf]
          %v1057 = vld [vmem:[%s3 + $0x20] sm:$0xf]
          %v1058 = vld [vmem:[%s3 + $0x24] sm:$0xf]
          %v1059 = vld [vmem:[%s3 + $0x28] sm:$0xf]
          %v1060 = vld [vmem:[%s3 + $0x2c] sm:$0xf]
          %v1061 = vld [vmem:[%s4] sm:$0x1]
          %v1063 = vlaneseq
          %v1064 = vshrl.u32 %v1063, 7
          %v1065 = vsub.s32 0, %v1064
          %v1066 = vrot.slane %v1061, %v1065
          %v1080 = vunpack.c.l.b16 %v1049
          %v1081 = vunpack.c.l.b16 %v1050
          %v1082 = vunpack.c.l.b16 %v1051
          %v1083 = vunpack.c.l.b16 %v1052
          %v1084 = vunpack.c.l.b16 %v1053
          %v1085 = vunpack.c.l.b16 %v1054
          %v1086 = vunpack.c.l.b16 %v1055
          %v1087 = vunpack.c.l.b16 %v1056
          %v1088 = vunpack.c.l.b16 %v1057
          %v1089 = vunpack.c.l.b16 %v1058
          %v1090 = vunpack.c.l.b16 %v1059
          %v1091 = vunpack.c.l.b16 %v1060
          %v1092 = vpack.c.b16 %v1081, %v1080
          %v1093 = vpack.c.b16 %v1083, %v1082
          %v1094 = vpack.c.b16 %v1085, %v1084
          %v1095 = vpack.c.b16 %v1087, %v1086
          %v1096 = vpack.c.b16 %v1089, %v1088
          %v1097 = vpack.c.b16 %v1091, %v1090
          %vm1104 = vcmask 785408
          %v1105 = vsel %vm1104, %v1034, 0
          %v1107 = vsel %vm1104, %v1036, 0
          %v1109 = vsel %vm1104, %v1038, 0
          %v1111 = vsel %vm1104, %v1040, 0
          %v1113 = vsel %vm1104, %v1042, 0
          %v1115 = vsel %vm1104, %v1044, 0
          %v1117 = vsel %vm1104, %v1046, 0
          %v1119 = vsel %vm1104, %v1048, 0
          %1121 = vmatprep.subr.bf16.mxu0 0
          %1122 = vmatpush1.bf16.msra.mxu0 %v1092
          %1123 = vmatprep.subr.bf16.mxu0 0
          %1124 = vmatpush1.bf16.msra.mxu0 %v1093
          %1125 = vmatprep.subr.bf16.mxu0 0
          %1126 = vmatpush1.bf16.msra.mxu0 %v1094
          %1127 = vmatprep.subr.bf16.mxu0 0
          %1128 = vmatpush1.bf16.msra.mxu0 %v1095
          %1129 = vmatprep.subr.bf16.mxu0 0
          %1130 = vmatpush1.bf16.msra.mxu0 %v1096
          %1131 = vmatprep.subr.bf16.mxu0 0
          %1132 = vmatpush1.bf16.msra.mxu0 %v1097
          %1133 = vmatprep.subr.bf16.mxu0 0
          %1134 = vmatpush1.bf16.msra.mxu0 0
          %1135 = vmatprep.subr.bf16.mxu0 0
          %1136 = vmatpush1.bf16.msra.mxu0 0
          %1137 = vmatprep.subr.bf16.mxu0 0
          %1138 = vmatpush1.bf16.msra.mxu0 0
          %1139 = vmatprep.subr.bf16.mxu0 0
          %1140 = vmatpush1.bf16.msra.mxu0 0
          %1141 = vmatprep.subr.bf16.mxu0 0
          %1142 = vmatpush1.bf16.msra.mxu0 0
          %1143 = vmatprep.subr.bf16.mxu0 0
          %1144 = vmatpush1.bf16.msra.mxu0 0
          %1145 = vmatprep.subr.bf16.mxu0 0
          %1146 = vmatpush1.bf16.msra.mxu0 0
          %1147 = vmatprep.subr.bf16.mxu0 0
          %1148 = vmatpush1.bf16.msra.mxu0 0
          %1149 = vmatprep.subr.bf16.mxu0 0
          %1150 = vmatpush1.bf16.msra.mxu0 0
          %1151 = vmatprep.subr.bf16.mxu0 0
          %1152 = vmatpush1.bf16.msra.mxu0 0
          %1153 = vmatprep.mubr.bf16.mxu0 0
          %1154 = vmatmul.mubr.bf16.gmra.mrb[0].mxu0 %v1105
          %v1155 = vpop.f32.mrb[0].mxu0
          %v1156 = vadd.f32 %v1066, %v1155
          %v1157 = vpop.f32.mrb[0].mxu0
          %v1158 = vpop.f32.mrb[0].mxu0
          %v1159 = vadd.f32 %v1066, %v1158
          %v1160 = vpop.f32.mrb[0].mxu0
          %1161 = vmatprep.mubr.bf16.mxu0 0
          %1162 = vmatmul.mubr.bf16.gmra.mrb[0].mxu0 %v1107
          %v1163 = vpop.f32.mrb[0].mxu0
          %v1164 = vadd.f32 %v1066, %v1163
          %v1165 = vpop.f32.mrb[0].mxu0
          %v1166 = vpop.f32.mrb[0].mxu0
          %v1167 = vadd.f32 %v1066, %v1166
          %v1168 = vpop.f32.mrb[0].mxu0
          %1169 = vmatprep.mubr.bf16.mxu0 0
          %1170 = vmatmul.mubr.bf16.gmra.mrb[0].mxu0 %v1109
          %v1171 = vpop.f32.mrb[0].mxu0
          %v1172 = vadd.f32 %v1066, %v1171
          %v1173 = vpop.f32.mrb[0].mxu0
          %v1174 = vpop.f32.mrb[0].mxu0
          %v1175 = vadd.f32 %v1066, %v1174
          %v1176 = vpop.f32.mrb[0].mxu0
          %1177 = vmatprep.mubr.bf16.mxu0 0
          %1178 = vmatmul.mubr.bf16.gmra.mrb[0].mxu0 %v1111
          %v1179 = vpop.f32.mrb[0].mxu0
          %v1180 = vadd.f32 %v1066, %v1179
          %v1181 = vpop.f32.mrb[0].mxu0
          %v1182 = vpop.f32.mrb[0].mxu0
          %v1183 = vadd.f32 %v1066, %v1182
          %v1184 = vpop.f32.mrb[0].mxu0
          %1185 = vmatprep.mubr.bf16.mxu0 0
          %1186 = vmatmul.mubr.bf16.gmra.mrb[0].mxu0 %v1113
          %v1187 = vpop.f32.mrb[0].mxu0
          %v1188 = vadd.f32 %v1066, %v1187
          %v1189 = vpop.f32.mrb[0].mxu0
          %v1190 = vpop.f32.mrb[0].mxu0
          %v1191 = vadd.f32 %v1066, %v1190
          %v1192 = vpop.f32.mrb[0].mxu0
          %1193 = vmatprep.mubr.bf16.mxu0 0
          %1194 = vmatmul.mubr.bf16.gmra.mrb[0].mxu0 %v1115
          %v1195 = vpop.f32.mrb[0].mxu0
          %v1196 = vadd.f32 %v1066, %v1195
          %v1197 = vpop.f32.mrb[0].mxu0
          %v1198 = vpop.f32.mrb[0].mxu0
          %v1199 = vadd.f32 %v1066, %v1198
          %v1200 = vpop.f32.mrb[0].mxu0
          %1201 = vmatprep.mubr.bf16.mxu0 0
          %1202 = vmatmul.mubr.bf16.gmra.mrb[0].mxu0 %v1117
          %v1203 = vpop.f32.mrb[0].mxu0
          %v1204 = vadd.f32 %v1066, %v1203
          %v1205 = vpop.f32.mrb[0].mxu0
          %v1206 = vpop.f32.mrb[0].mxu0
          %v1207 = vadd.f32 %v1066, %v1206
          %v1208 = vpop.f32.mrb[0].mxu0
          %1209 = vmatprep.mubr.bf16.mxu0 0
          %1210 = vmatmul.mubr.bf16.gmra.mrb[0].mxu0 %v1119
          %v1211 = vpop.f32.mrb[0].mxu0
          %v1212 = vadd.f32 %v1066, %v1211
          %v1213 = vpop.f32.mrb[0].mxu0
          %v1214 = vpop.f32.mrb[0].mxu0
          %v1215 = vadd.f32 %v1066, %v1214
          %v1216 = vpop.f32.mrb[0].mxu0
          %1217 = vdwg.mxu0
          %1218 = vst [vmem:[%s315] sm:$0xff] %v1156
          %1219 = vst [vmem:[%s315 + $0x8] sm:$0xff] %v1159
          %1220 = vst [vmem:[%s315 + $0x10] sm:$0xff] %v1164
          %1221 = vst [vmem:[%s315 + $0x18] sm:$0xff] %v1167
          %1222 = vst [vmem:[%s315 + $0x20] sm:$0xff] %v1172
          %1223 = vst [vmem:[%s315 + $0x28] sm:$0xff] %v1175
          %1224 = vst [vmem:[%s315 + $0x30] sm:$0xff] %v1180
          %1225 = vst [vmem:[%s315 + $0x38] sm:$0xff] %v1183
          %1226 = vst [vmem:[%s315 + $0x40] sm:$0xff] %v1188
          %1227 = vst [vmem:[%s315 + $0x48] sm:$0xff] %v1191
          %1228 = vst [vmem:[%s315 + $0x50] sm:$0xff] %v1196
          %1229 = vst [vmem:[%s315 + $0x58] sm:$0xff] %v1199
          %1230 = vst [vmem:[%s315 + $0x60] sm:$0xff] %v1204
          %1231 = vst [vmem:[%s315 + $0x68] sm:$0xff] %v1207
          %1232 = vst [vmem:[%s315 + $0x70] sm:$0xff] %v1212
          %1233 = vst [vmem:[%s315 + $0x78] sm:$0xff] %v1215
        $region52: #{tpu_custom_call.1} parent=39 // pred_fallthru
          _
        %s1234 = sand.u32 %s164, 1
        %s1235 = scalar_lea.sflag [#allocation6], %s1234
        %s1236 = sand.u32 %s164, 1
        %s1237 = smul.addr %s1236, 128
        %s1238 = scalar_lea.vmem [#allocation7], %s1237
        // Predicated region
        $region53: #{tpu_custom_call.1} parent=39 // pred_check
          %p1239 = pneg %p174
        $region54: #{tpu_custom_call.1} parent=39 // pred_check_branch
          %1241 = sbr.rel (%p1239) target = $region56
        $region55: #{tpu_custom_call.1} parent=39 // pred_region
          %s1242 = smul.u32 16, %s26
          %s1244 = ssub.s32 2048, 2048
          %1245 = vsyncadd %s1235, %s1244
          %s1246 = smul.addr %s1242, 128
          %s1247 = scalar_lea.hbm %s5, %s1246
          %s1248 = sshll.u32 %s1238, 4
          %s1249 = int_to_ptr.vmem [resolvable:$true] %s1248
          %1254 = dma.vmem_to_hbm [thread:$0]  %s1249, 2048, %s1247, %s1235, 128, 128, 8
        $region56: #{tpu_custom_call.1} parent=39 // pred_fallthru
          _
      $region40: #{tpu_custom_call.1} parent=5 // pred_fallthru
        _
      %p1255 = scmp.le.s32.totalorder 2, %s17
      // Predicated region
      $region57: #{tpu_custom_call.1} parent=5 // pred_check
        %p1256 = pneg %p1255
      $region58: #{tpu_custom_call.1} parent=5 // pred_check_branch
        %1258 = sbr.rel (%p1256) target = $region60
      $region59: #{tpu_custom_call.1} parent=5 // pred_region
        %s1259 = ssub.s32 %s17, 2
        // Predicated region
        $region61: #{tpu_custom_call.1} parent=59 // pred_check
          %p1260 = pneg %p180
        $region62: #{tpu_custom_call.1} parent=59 // pred_check_branch
          %1262 = sbr.rel (%p1260) target = $region64
        $region63: #{tpu_custom_call.1} parent=59 // pred_region
          %s1263 = sand.u32 %s165, 1
          %s1264 = scalar_lea.sflag [#allocation6], %s1263
          %s1265 = sand.u32 %s165, 1
          %s1266 = smul.addr %s1265, 128
          %s1267 = scalar_lea.vmem [#allocation7], %s1266
          %1268 = dma.done %s1264, 2048
        $region64: #{tpu_custom_call.1} parent=59 // pred_fallthru
          _
      $region60: #{tpu_custom_call.1} parent=5 // pred_fallthru
        _
    $region6: #{tpu_custom_call.1} parent=1 // loop_footer
      %s21 = sadd.s32 1, %s17
    $region7: #{tpu_custom_call.1} parent=1 // loop_footer_branch
      %16 = sbr.rel target = $region3
    $region8: #{tpu_custom_call.1} parent=1 // loop_exit
      _
    %1269 = vsyncpa [#allocation5], 1
    %s1270 = scalar_lea.sflag [#allocation5], 1
    %1271 = vsyncpa %s1270, 1
    %1272 = vsyncpa [#allocation6], 1
    %s1273 = scalar_lea.sflag [#allocation6], 1
    %1274 = vsyncpa %s1273, 1

</llo_original>
